<compile_context>
chip_gen: v5e
topology: v5e:2x2
jax: 0.10.0
libtpu: 0.0.40
codegen_flags: <defaults>
</compile_context>

<pallas_src>
import functools
import math

import jax
import jax.numpy as jnp
from jax.experimental import pallas as pl
from jax.experimental.pallas import tpu as pltpu

_LANE_COLS = 1024          # lane-dense last dim: large multiple of 128
_MAX_BLOCK_ROWS = 512      # 512 x 1024 x 4 B = 2 MiB per f32 block


def _round_up(x, m):
    return ((x + m - 1) // m) * m


def _dropout_kernel(x_ref, bits_ref, o_ref, *, threshold, scale):
    """Dropout on one (TM, COLS) tile: keep iff bits >= threshold, scale kept values."""
    x = x_ref[...]
    bits = bits_ref[...]
    keep = bits >= jnp.uint32(threshold)          # P(keep) = 1 - p, pure integer compare
    scaled = x * jnp.asarray(scale, dtype=x.dtype)  # stay in input dtype (bf16-friendly)
    o_ref[...] = jnp.where(keep, scaled, jnp.zeros_like(scaled))


def add_noise_layer(clean_repre, dropout_p, *, training=True, key=None):
    """JAX/Pallas equivalent of addnoiselayer.forward (F.dropout)."""
    if (not training) or dropout_p <= 0.0:
        return clean_repre                         # identity in eval mode or p == 0
    if dropout_p >= 1.0:
        return jnp.zeros_like(clean_repre)         # F.dropout(p=1) zeroes everything
    if key is None:
        key = jax.random.PRNGKey(0)

    orig_shape = clean_repre.shape
    dtype = clean_repre.dtype
    total = int(math.prod(orig_shape))

    cols = _LANE_COLS
    rows = -(-total // cols)
    block_rows = min(_MAX_BLOCK_ROWS, _round_up(rows, 8))
    rows_padded = _round_up(rows, block_rows)
    padded_total = rows_padded * cols

    x_flat = clean_repre.reshape(-1)
    if padded_total != total:
        x_flat = jnp.pad(x_flat, (0, padded_total - total))
    x2d = x_flat.reshape(rows_padded, cols)

    # Random bits for the whole (padded) slab; streamed tile-by-tile with x.
    bits2d = jax.random.bits(key, (rows_padded, cols), dtype=jnp.uint32)

    threshold = min(max(int(round(float(dropout_p) * (1 << 32))), 0), (1 << 32) - 1)
    scale = 1.0 / (1.0 - float(dropout_p))

    grid = (rows_padded // block_rows,)
    kernel = functools.partial(_dropout_kernel, threshold=threshold, scale=scale)

    itemsize = jnp.dtype(dtype).itemsize
    # NOTE: input_output_aliases={0: 0} would drop one activation-sized HBM
    # allocation if the clean activation is dead afterwards; omitted here to
    # keep the run warning-free on all backends.
    out2d = pl.pallas_call(
        kernel,
        out_shape=jax.ShapeDtypeStruct((rows_padded, cols), dtype),
        grid=grid,
        in_specs=[
            pl.BlockSpec((block_rows, cols), lambda i: (i, 0)),
            pl.BlockSpec((block_rows, cols), lambda i: (i, 0)),
        ],
        out_specs=pl.BlockSpec((block_rows, cols), lambda i: (i, 0)),
        compiler_params=pltpu.CompilerParams(
            dimension_semantics=("parallel",),
        ),
        cost_estimate=pl.CostEstimate(
            flops=3 * padded_total,
            transcendentals=0,
            bytes_accessed=padded_total * (2 * itemsize + 4),
        ),
    )(x2d, bits2d)

    out_flat = out2d.reshape(padded_total)
    if padded_total != total:
        out_flat = out_flat[:total]
    return out_flat.reshape(orig_shape)


if __name__ == "__main__":
    key = jax.random.PRNGKey(0)
    xkey, dkey = jax.random.split(key)
    # Small NCHW input consistent with a conv-style "clean representation".
    x = jax.random.normal(xkey, (2, 4, 16, 16), dtype=jnp.float32)

    dropout_p = 0.5
    out = add_noise_layer(x, dropout_p, training=True, key=dkey)
    out = jax.block_until_ready(out)

    # Sanity checks of F.dropout semantics.
    assert out.shape == x.shape and out.dtype == x.dtype
    scale = 1.0 / (1.0 - dropout_p)
    kept = out != 0.0
    max_err = jnp.max(jnp.abs(jnp.where(kept, out - x * scale, 0.0)))
    assert float(max_err) < 1e-5
    # Roughly half the elements should be dropped (loose bound for a small sample).
    keep_frac = float(jnp.mean(kept.astype(jnp.float32)))
    assert 0.35 < keep_frac < 0.65
    # Eval mode is identity.
    assert bool(jnp.all(add_noise_layer(x, dropout_p, training=False) == x))

    print("KERNEL_OK")
</pallas_src>

<mosaic_0001>
module attributes {stable_mosaic.version = 11 : i64} {
  func.func @_dropout_kernel(%arg0: i32, %arg1: memref<8x1024xf32, #tpu.memory_space<vmem>>, %arg2: memref<8x1024xi32, #tpu.memory_space<vmem>>, %arg3: memref<8x1024xf32, #tpu.memory_space<vmem>>) attributes {dimension_semantics = [#tpu.dimension_semantics<parallel>], iteration_bounds = array<i64: 1>, scalar_prefetch = 0 : i64, scratch_operands = 0 : i64, tpu.core_type = #tpu.core_type<tc>, window_params = [{transform_indices = @transform_0, window_bounds = array<i64: 8, 1024>}, {transform_indices = @transform_1, window_bounds = array<i64: 8, 1024>}, {transform_indices = @transform_2, window_bounds = array<i64: 8, 1024>}]} {
    %c0 = arith.constant 0 : index
    %c0_0 = arith.constant 0 : index
    %0 = vector.load %arg1[%c0, %c0_0] : memref<8x1024xf32, #tpu.memory_space<vmem>>, vector<8x1024xf32>
    %c0_1 = arith.constant 0 : index
    %c0_2 = arith.constant 0 : index
    %1 = vector.load %arg2[%c0_1, %c0_2] : memref<8x1024xi32, #tpu.memory_space<vmem>>, vector<8x1024xi32>
    %c-2147483648_i32 = arith.constant -2147483648 : i32
    %2 = vector.broadcast %c-2147483648_i32 : i32 to vector<8x1024xi32>
    %3 = arith.cmpi uge, %1, %2 : vector<8x1024xi32>
    %cst = arith.constant 2.000000e+00 : f32
    %4 = vector.broadcast %cst : f32 to vector<8x1024xf32>
    %5 = arith.mulf %0, %4 : vector<8x1024xf32>
    %cst_3 = arith.constant 0.000000e+00 : f32
    %6 = vector.broadcast %cst_3 : f32 to vector<8x1024xf32>
    %7 = arith.select %3, %5, %6 : vector<8x1024xi1>, vector<8x1024xf32>
    %c0_4 = arith.constant 0 : index
    %c0_5 = arith.constant 0 : index
    %8 = vector.load %arg3[%c0_4, %c0_5] : memref<8x1024xf32, #tpu.memory_space<vmem>>, vector<8x1024xf32>
    tpu.vector_store %arg3[%c0_4, %c0_5], %7 {strides = array<i32>} : memref<8x1024xf32, #tpu.memory_space<vmem>>, vector<8x1024xf32>,
    return
  }
  func.func @transform_0(%arg0: i32) -> (i32, i32) {
    %c0_i32 = arith.constant 0 : i32
    %c0_i32_0 = arith.constant 0 : i32
    return %arg0, %c0_i32 : i32, i32
  }
  func.func @transform_1(%arg0: i32) -> (i32, i32) {
    %c0_i32 = arith.constant 0 : i32
    %c0_i32_0 = arith.constant 0 : i32
    return %arg0, %c0_i32 : i32, i32
  }
  func.func @transform_2(%arg0: i32) -> (i32, i32) {
    %c0_i32 = arith.constant 0 : i32
    %c0_i32_0 = arith.constant 0 : i32
    return %arg0, %c0_i32 : i32, i32
  }
}

</mosaic_0001>

<llo_original>
// kernel: tpu_custom_call.1
$region0: #{tpu_custom_call.1}
  #allocation0 [shape = 'u32[]', space=smem, size = 0x4, offset = 0x4, fixed_abs, tag = 'smem constant byte address 0x4 - core index']
  #allocation1 [shape = 'u32[72,128]{1,0:T(1,128)}', space=vmem, size = 0x9000, scoped, tag = 'internal scratch']
  %s0 = inlined_call_operand.hbm [shape: f32[8,1024], index: 0, kind: input, shape index: {}]
  %s1 = inlined_call_operand.hbm [shape: u32[8,1024], index: 1, kind: input, shape index: {}]
  %s2 = inlined_call_operand.hbm [shape: f32[8,1024], index: 2, kind: output, shape index: {}]
  %s3 = sld [smem:[#allocation0]]
  $region26: #{tpu_custom_call.1} parent=0
    _
  %s5 = ssub.s32 1, %s3
  %s6 = scalar_select 0, %s5, %s3
  $region1: #{tpu_custom_call.1} parent=0
    #allocation2 [shape = 'u8[32768]{0}', space=vmem, size = 0x8000, scoped, tag = 'input window, operand 0, single buffered']
    #allocation3 [shape = 's32[1]{0}', space=sflag, size = 0x4, scoped, tag = 'scoped memory for tpu_custom_call.1']
    #allocation4 [shape = 's32[1]{0}', space=sflag, size = 0x4, scoped, tag = 'scoped memory for tpu_custom_call.1']
    #allocation5 [shape = 'u8[32768]{0}', space=vmem, size = 0x8000, scoped, tag = 'input window, operand 1, single buffered']
    #allocation6 [shape = 's32[1]{0}', space=sflag, size = 0x4, scoped, tag = 'scoped memory for tpu_custom_call.1']
    #allocation7 [shape = 'u8[32768]{0}', space=vmem, size = 0x8000, scoped, tag = 'output window, operand 0, single buffered']
    %7 = vsyncpa [#allocation3], 0
    %8 = vsyncpa [#allocation6], 0
    %9 = vsyncpa [#allocation4], 0
    // Predicated region
    $region2: #{tpu_custom_call.1} parent=1 // pred_check
      _
    $region3: #{tpu_custom_call.1} parent=1 // pred_check_branch
      %11 = sbr.rel (0) target = $region5
    $region4: #{tpu_custom_call.1} parent=1 // pred_region
      %13 = vsyncadd [#allocation3], 0
      %s15 = sshll.u32 %s0, 4
      %s16 = int_to_ptr.hbm [resolvable:$true] %s15
      %s17 = sshll.u32 [#allocation2], 4
      %s18 = int_to_ptr.vmem [resolvable:$true] %s17
      %20 = dma.hbm_to_vmem [thread:$0]  %s16, 1024, %s18, [#allocation3]
    $region5: #{tpu_custom_call.1} parent=1 // pred_fallthru
      _
    // Predicated region
    $region6: #{tpu_custom_call.1} parent=1 // pred_check
      _
    $region7: #{tpu_custom_call.1} parent=1 // pred_check_branch
      %22 = sbr.rel (0) target = $region9
    $region8: #{tpu_custom_call.1} parent=1 // pred_region
      %24 = vsyncadd [#allocation6], 0
      %s26 = sshll.u32 %s1, 4
      %s27 = int_to_ptr.hbm [resolvable:$true] %s26
      %s28 = sshll.u32 [#allocation5], 4
      %s29 = int_to_ptr.vmem [resolvable:$true] %s28
      %31 = dma.hbm_to_vmem [thread:$0]  %s27, 1024, %s29, [#allocation6]
    $region9: #{tpu_custom_call.1} parent=1 // pred_fallthru
      _
    // Predicated region
    $region10: #{tpu_custom_call.1} parent=1 // pred_check
      _
    $region11: #{tpu_custom_call.1} parent=1 // pred_check_branch
      %33 = sbr.rel (0) target = $region13
    $region12: #{tpu_custom_call.1} parent=1 // pred_region
      %35 = dma.done [#allocation3], 1024
    $region13: #{tpu_custom_call.1} parent=1 // pred_fallthru
      _
    // Predicated region
    $region14: #{tpu_custom_call.1} parent=1 // pred_check
      _
    $region15: #{tpu_custom_call.1} parent=1 // pred_check_branch
      %37 = sbr.rel (0) target = $region17
    $region16: #{tpu_custom_call.1} parent=1 // pred_region
      %39 = dma.done [#allocation6], 1024
    $region17: #{tpu_custom_call.1} parent=1 // pred_fallthru
      _
    %v40 = vld [vmem:[#allocation2] sm:$0xff]
    %v41 = vld [vmem:[#allocation2 + $0x8] sm:$0xff]
    %v42 = vld [vmem:[#allocation2 + $0x10] sm:$0xff]
    %v43 = vld [vmem:[#allocation2 + $0x18] sm:$0xff]
    %v44 = vld [vmem:[#allocation2 + $0x20] sm:$0xff]
    %v45 = vld [vmem:[#allocation2 + $0x28] sm:$0xff]
    %v46 = vld [vmem:[#allocation2 + $0x30] sm:$0xff]
    %v47 = vld [vmem:[#allocation2 + $0x38] sm:$0xff]
    %v48 = vld [vmem:[#allocation5] sm:$0xff]
    %v49 = vld [vmem:[#allocation5 + $0x8] sm:$0xff]
    %v50 = vld [vmem:[#allocation5 + $0x10] sm:$0xff]
    %v51 = vld [vmem:[#allocation5 + $0x18] sm:$0xff]
    %v52 = vld [vmem:[#allocation5 + $0x20] sm:$0xff]
    %v53 = vld [vmem:[#allocation5 + $0x28] sm:$0xff]
    %v54 = vld [vmem:[#allocation5 + $0x30] sm:$0xff]
    %v55 = vld [vmem:[#allocation5 + $0x38] sm:$0xff]
    %v56 = vadd.s32 %v48, 2147483648
    %vm58 = vcmp.ge.s32.totalorder %v56, 0
    %v59 = vadd.s32 %v49, 2147483648
    %vm61 = vcmp.ge.s32.totalorder %v59, 0
    %v62 = vadd.s32 %v50, 2147483648
    %vm64 = vcmp.ge.s32.totalorder %v62, 0
    %v65 = vadd.s32 %v51, 2147483648
    %vm67 = vcmp.ge.s32.totalorder %v65, 0
    %v68 = vadd.s32 %v52, 2147483648
    %vm70 = vcmp.ge.s32.totalorder %v68, 0
    %v71 = vadd.s32 %v53, 2147483648
    %vm73 = vcmp.ge.s32.totalorder %v71, 0
    %v74 = vadd.s32 %v54, 2147483648
    %vm76 = vcmp.ge.s32.totalorder %v74, 0
    %v77 = vadd.s32 %v55, 2147483648
    %vm79 = vcmp.ge.s32.totalorder %v77, 0
    %v80 = vmul.f32 %v40, 2.0
    %v81 = vmul.f32 %v41, 2.0
    %v82 = vmul.f32 %v42, 2.0
    %v83 = vmul.f32 %v43, 2.0
    %v84 = vmul.f32 %v44, 2.0
    %v85 = vmul.f32 %v45, 2.0
    %v86 = vmul.f32 %v46, 2.0
    %v87 = vmul.f32 %v47, 2.0
    %v88 = vsel %vm58, %v80, 0.0
    %v89 = vsel %vm61, %v81, 0.0
    %v90 = vsel %vm64, %v82, 0.0
    %v91 = vsel %vm67, %v83, 0.0
    %v92 = vsel %vm70, %v84, 0.0
    %v93 = vsel %vm73, %v85, 0.0
    %v94 = vsel %vm76, %v86, 0.0
    %v95 = vsel %vm79, %v87, 0.0
    %96 = vst [vmem:[#allocation7] sm:$0xff] %v88
    %97 = vst [vmem:[#allocation7 + $0x8] sm:$0xff] %v89
    %98 = vst [vmem:[#allocation7 + $0x10] sm:$0xff] %v90
    %99 = vst [vmem:[#allocation7 + $0x18] sm:$0xff] %v91
    %100 = vst [vmem:[#allocation7 + $0x20] sm:$0xff] %v92
    %101 = vst [vmem:[#allocation7 + $0x28] sm:$0xff] %v93
    %102 = vst [vmem:[#allocation7 + $0x30] sm:$0xff] %v94
    %103 = vst [vmem:[#allocation7 + $0x38] sm:$0xff] %v95
    // Predicated region
    $region18: #{tpu_custom_call.1} parent=1 // pred_check
      _
    $region19: #{tpu_custom_call.1} parent=1 // pred_check_branch
      %105 = sbr.rel (0) target = $region21
    $region20: #{tpu_custom_call.1} parent=1 // pred_region
      %107 = vsyncadd [#allocation4], 0
      %s109 = sshll.u32 [#allocation7], 4
      %s110 = int_to_ptr.vmem [resolvable:$true] %s109
      %s111 = sshll.u32 %s2, 4
      %s112 = int_to_ptr.hbm [resolvable:$true] %s111
      %114 = dma.vmem_to_hbm [thread:$0]  %s110, 1024, %s112, [#allocation4]
    $region21: #{tpu_custom_call.1} parent=1 // pred_fallthru
      _
    // Predicated region
    $region22: #{tpu_custom_call.1} parent=1 // pred_check
      _
    $region23: #{tpu_custom_call.1} parent=1 // pred_check_branch
      %116 = sbr.rel (0) target = $region25
    $region24: #{tpu_custom_call.1} parent=1 // pred_region
      %118 = dma.done [#allocation4], 1024
    $region25: #{tpu_custom_call.1} parent=1 // pred_fallthru
      _
    %119 = vsyncpa [#allocation3], 1
    %120 = vsyncpa [#allocation6], 1
    %121 = vsyncpa [#allocation4], 1

</llo_original>
